<compile_context>
chip_gen: v6e
topology: v6e:2x2x1
jax: 0.10.0
libtpu: 0.0.40
codegen_flags: <defaults>
</compile_context>

<pallas_src>
import jax
import jax.numpy as jnp
from jax.experimental import pallas as pl
from jax.experimental.pallas import tpu as pltpu


# ---------------------------------------------------------------------------
# Stage 1: feature transform  H = X2 @ W   (X2 = x reshaped to [B*N, Cin])
# ---------------------------------------------------------------------------
def _feature_kernel(x_ref, w_ref, h_ref):
    h_ref[...] = jnp.dot(
        x_ref[...], w_ref[...], preferred_element_type=jnp.float32
    ).astype(h_ref.dtype)


# ---------------------------------------------------------------------------
# Stage 2: aggregation  out_wide = adj_tile @ H_wide + bias_wide
#   adj_ref : [block_n, N]     h_ref : [N, Lpad]    (Lpad = roundup(B*Cout,128))
#   b_ref   : [1, Lpad] (f32)  o_ref : [block_n, Lpad]
# ---------------------------------------------------------------------------
def _aggregate_kernel(adj_ref, h_ref, b_ref, o_ref):
    acc = jnp.dot(adj_ref[...], h_ref[...], preferred_element_type=jnp.float32)
    o_ref[...] = (acc + b_ref[...]).astype(o_ref.dtype)


def _pick_tile(total, candidates):
    for c in candidates:
        if total % c == 0:
            return c
    return total  # full-array exemption from the (8,128) rule


def gcn_forward(x, adj, weight, bias, *, compute_dtype=jnp.bfloat16, block_n=None):
    """x: [B, N, Cin], adj: [N, N], weight: [Cin, Cout], bias: [Cout]."""
    B, N, Cin = x.shape
    Cout = weight.shape[1]
    assert adj.shape == (N, N)
    assert weight.shape == (Cin, Cout)
    assert bias.shape == (Cout,)

    out_dtype = x.dtype
    cdt = jnp.dtype(compute_dtype)

    # ---- Stage 1: H = x @ W for ALL batches as one well-shaped MXU matmul.
    x2 = x.reshape(B * N, Cin).astype(cdt)
    w = weight.astype(cdt)
    tm = _pick_tile(B * N, (512, 256, 128, 64, 32, 16, 8))
    h = pl.pallas_call(
        _feature_kernel,
        out_shape=jax.ShapeDtypeStruct((B * N, Cout), cdt),
        grid=(B * N // tm,),
        in_specs=[
            pl.BlockSpec((tm, Cin), lambda i: (i, 0)),
            pl.BlockSpec((Cin, Cout), lambda i: (0, 0)),
        ],
        out_specs=pl.BlockSpec((tm, Cout), lambda i: (i, 0)),
        compiler_params=pltpu.CompilerParams(dimension_semantics=("parallel",)),
    )(x2, w)

    # ---- Layout plumbing (wrapper-side): fold batch into the lane dim so adj
    # is streamed from HBM exactly once and stores are lane-dense.
    L = B * Cout
    Lpad = ((L + 127) // 128) * 128
    h_wide = h.reshape(B, N, Cout).transpose(1, 0, 2).reshape(N, L)
    bias_wide = jnp.tile(bias, B)
    if Lpad != L:
        h_wide = jnp.pad(h_wide, ((0, 0), (0, Lpad - L)))
        bias_wide = jnp.pad(bias_wide, (0, Lpad - L))
    h_wide = h_wide.astype(cdt)
    bias_wide = bias_wide.reshape(1, Lpad).astype(jnp.float32)
    adj_c = adj.astype(cdt)

    # ---- Stage 2 tiling: largest adj row-tile dividing N that keeps the
    # per-step working set inside a conservative (v7x-safe) VMEM budget.
    # TODO(synk): ragged N (N not divisible by 8) falls back to block_n = N.
    if block_n is None:
        budget = 24 * 1024 * 1024
        block_n = N
        for cand in (1024, 512, 256, 128, 64, 32, 16, 8):
            per_step = (
                2 * cand * N * cdt.itemsize                      # adj (2 bufs)
                + 2 * N * Lpad * cdt.itemsize                    # H_wide
                + 2 * cand * Lpad * jnp.dtype(out_dtype).itemsize  # out (2 bufs)
            )
            if N % cand == 0 and per_step <= budget:
                block_n = cand
                break
    assert N % block_n == 0
    n_tiles = N // block_n

    vmem_need = (
        2 * block_n * N * cdt.itemsize
        + 2 * N * Lpad * cdt.itemsize
        + 2 * Lpad * 4
        + 2 * block_n * Lpad * jnp.dtype(out_dtype).itemsize
    )
    vmem_limit = int(min(max(2 * vmem_need, 16 << 20), 64 << 20))

    out_wide = pl.pallas_call(
        _aggregate_kernel,
        out_shape=jax.ShapeDtypeStruct((N, Lpad), out_dtype),
        grid=(n_tiles,),
        in_specs=[
            pl.BlockSpec((block_n, N), lambda nt: (nt, 0)),   # adj row tile
            pl.BlockSpec((N, Lpad), lambda nt: (0, 0)),       # H_wide (constant)
            pl.BlockSpec((1, Lpad), lambda nt: (0, 0)),       # bias (constant)
        ],
        out_specs=pl.BlockSpec((block_n, Lpad), lambda nt: (nt, 0)),
        compiler_params=pltpu.CompilerParams(
            dimension_semantics=("parallel",),   # legal now: no scratch init
            vmem_limit_bytes=vmem_limit,
        ),
    )(adj_c, h_wide, bias_wide)

    # Unfold lanes back to [B, N, Cout].
    out = out_wide[:, :L].reshape(N, B, Cout).transpose(1, 0, 2)
    return out


# ---------------------------------------------------------------------------
# Pure-JAX reference (for correctness check)
# ---------------------------------------------------------------------------
def gcn_ref(x, adj, weight, bias):
    h = jnp.einsum("bnc,co->bno", x, weight)
    return jnp.einsum("nm,bmo->bno", adj, h) + bias


if __name__ == "__main__":
    B, N, Cin, Cout = 2, 16, 8, 32

    key = jax.random.PRNGKey(0)
    kx, ka, kw = jax.random.split(key, 3)

    x = jax.random.normal(kx, (B, N, Cin), dtype=jnp.float32)
    adj = jax.random.uniform(ka, (N, N), dtype=jnp.float32)
    adj = (adj + adj.T) * 0.5                                        # adjacency-like
    weight = jax.random.uniform(kw, (Cin, Cout), dtype=jnp.float32)  # torch.rand
    bias = jnp.zeros((Cout,), dtype=jnp.float32)                     # torch.zeros

    ref = gcn_ref(x, adj, weight, bias)

    # f32 compute path: exact check.
    out_f32 = jax.block_until_ready(
        gcn_forward(x, adj, weight, bias, compute_dtype=jnp.float32)
    )
    assert out_f32.shape == (B, N, Cout)
    assert jnp.allclose(out_f32, ref, atol=1e-4, rtol=1e-4), (
        f"f32 max abs err = {jnp.max(jnp.abs(out_f32 - ref))}"
    )

    # bf16 MXU-input path (f32 accumulation) — the default fast path.
    out_bf16 = jax.block_until_ready(gcn_forward(x, adj, weight, bias))
    assert out_bf16.shape == (B, N, Cout)
    assert jnp.allclose(out_bf16, ref, atol=0.15, rtol=0.05), (
        f"bf16 max abs err = {jnp.max(jnp.abs(out_bf16 - ref))}"
    )

    print("KERNEL_OK")
</pallas_src>

<mosaic_0001>
module attributes {stable_mosaic.version = 11 : i64} {
  func.func @_feature_kernel(%arg0: i32, %arg1: memref<32x8xf32, #tpu.memory_space<vmem>>, %arg2: memref<8x32xf32, #tpu.memory_space<vmem>>, %arg3: memref<32x32xf32, #tpu.memory_space<vmem>>) attributes {dimension_semantics = [#tpu.dimension_semantics<parallel>], iteration_bounds = array<i64: 1>, scalar_prefetch = 0 : i64, scratch_operands = 0 : i64, tpu.core_type = #tpu.core_type<tc>, window_params = [{transform_indices = @transform_0, window_bounds = array<i64: 32, 8>}, {pipeline_mode = #tpu.pipeline_mode<synchronous>, transform_indices = @transform_1, window_bounds = array<i64: 8, 32>}, {transform_indices = @transform_2, window_bounds = array<i64: 32, 32>}]} {
    %c0 = arith.constant 0 : index
    %c0_0 = arith.constant 0 : index
    %0 = vector.load %arg1[%c0, %c0_0] : memref<32x8xf32, #tpu.memory_space<vmem>>, vector<32x8xf32>
    %c0_1 = arith.constant 0 : index
    %c0_2 = arith.constant 0 : index
    %1 = vector.load %arg2[%c0_1, %c0_2] : memref<8x32xf32, #tpu.memory_space<vmem>>, vector<8x32xf32>
    %cst = arith.constant dense<0.000000e+00> : vector<32x32xf32>
    %2 = tpu.matmul %0, %1, %cst {dimension_numbers = #tpu.dot_dimension_numbers<[1], [0], [0], [1], [0, 0, 1, 1], [], []>} : vector<32x8xf32>, vector<8x32xf32>, vector<32x32xf32> -> vector<32x32xf32>
    %c0_3 = arith.constant 0 : index
    %c0_4 = arith.constant 0 : index
    %3 = vector.load %arg3[%c0_3, %c0_4] : memref<32x32xf32, #tpu.memory_space<vmem>>, vector<32x32xf32>
    tpu.vector_store %arg3[%c0_3, %c0_4], %2 {strides = array<i32>} : memref<32x32xf32, #tpu.memory_space<vmem>>, vector<32x32xf32>,
    return
  }
  func.func @transform_0(%arg0: i32) -> (i32, i32) {
    %c0_i32 = arith.constant 0 : i32
    %c0_i32_0 = arith.constant 0 : i32
    return %arg0, %c0_i32 : i32, i32
  }
  func.func @transform_1(%arg0: i32) -> (i32, i32) {
    %c0_i32 = arith.constant 0 : i32
    %c0_i32_0 = arith.constant 0 : i32
    %c0_i32_1 = arith.constant 0 : i32
    return %c0_i32, %c0_i32_0 : i32, i32
  }
  func.func @transform_2(%arg0: i32) -> (i32, i32) {
    %c0_i32 = arith.constant 0 : i32
    %c0_i32_0 = arith.constant 0 : i32
    return %arg0, %c0_i32 : i32, i32
  }
}

</mosaic_0001>

<llo_original>
// kernel: tpu_custom_call.1
$region0: #{tpu_custom_call.1}
  #allocation0 [shape = 'u32[]', space=smem, size = 0x4, offset = 0x4, fixed_abs, tag = 'smem constant byte address 0x4 - core index']
  #allocation1 [shape = 'u32[144,128]{1,0:T(1,128)}', space=vmem, size = 0x12000, scoped, tag = 'internal scratch']
  %s0 = inlined_call_operand.vmem [shape: f32[32,8], index: 0, kind: input, shape index: {}]
  %s1 = inlined_call_operand.vmem [shape: f32[8,32], index: 1, kind: input, shape index: {}]
  %s2 = inlined_call_operand.hbm [shape: f32[32,32], index: 2, kind: output, shape index: {}]
  %s3 = sld [smem:[#allocation0]]
  $region18: #{tpu_custom_call.1} parent=0
    _
  %s5 = ssub.s32 1, %s3
  %s6 = scalar_select 0, %s5, %s3
  $region1: #{tpu_custom_call.1} parent=0
    #allocation2 [shape = 'u8[16384]{0}', space=vmem, size = 0x4000, scoped, tag = 'output window, operand 0, single buffered']
    #allocation3 [shape = 's32[1]{0}', space=sflag, size = 0x4, scoped, tag = 'scoped memory for tpu_custom_call.1']
    %7 = vsyncpa [#allocation3], 0
    // Predicated region
    $region2: #{tpu_custom_call.1} parent=1 // pred_check
      _
    $region3: #{tpu_custom_call.1} parent=1 // pred_check_branch
      %9 = sbr.rel (0) target = $region5
    $region4: #{tpu_custom_call.1} parent=1 // pred_region
      _
    $region5: #{tpu_custom_call.1} parent=1 // pred_fallthru
      _
    // Predicated region
    $region6: #{tpu_custom_call.1} parent=1 // pred_check
      _
    $region7: #{tpu_custom_call.1} parent=1 // pred_check_branch
      %11 = sbr.rel (0) target = $region9
    $region8: #{tpu_custom_call.1} parent=1 // pred_region
      _
    $region9: #{tpu_custom_call.1} parent=1 // pred_fallthru
      _
    %v12 = vld [vmem:[%s0] sm:$0xff]
    %v13 = vld [vmem:[%s0 + $0x8] sm:$0xff]
    %v14 = vld [vmem:[%s0 + $0x10] sm:$0xff]
    %v15 = vld [vmem:[%s0 + $0x18] sm:$0xff]
    %v16 = vld [vmem:[%s1] sm:$0xff]
    %vm17 = vcmask 64512
    %v19 = vsel %vm17, %v12, 0
    %v22 = vsel %vm17, %v13, 0
    %v25 = vsel %vm17, %v14, 0
    %v28 = vsel %vm17, %v15, 0
    %30 = vmatprep.subr.mxu0 0.0
    %31 = vmatpush1.msra.mxu0 0.0
    %32 = vmatprep.subr.mxu0 0.0
    %33 = vmatpush1.msra.mxu0 0.0
    %34 = vmatprep.subr.mxu0 0.0
    %35 = vmatpush1.msra.mxu0 0.0
    %36 = vmatprep.subr.mxu0 0.0
    %37 = vmatpush1.msra.mxu0 0.0
    %38 = vmatprep.subr.mxu0 0.0
    %39 = vmatpush1.msra.mxu0 0.0
    %40 = vmatprep.subr.mxu0 0.0
    %41 = vmatpush1.msra.mxu0 0.0
    %42 = vmatprep.subr.mxu0 0.0
    %43 = vmatpush1.msra.mxu0 0.0
    %44 = vmatprep.subr.mxu0 0.0
    %45 = vmatpush1.msra.mxu0 0.0
    %46 = vmatprep.subr.mxu0 0.0
    %47 = vmatpush1.msra.mxu0 0.0
    %48 = vmatprep.subr.mxu0 0.0
    %49 = vmatpush1.msra.mxu0 0.0
    %50 = vmatprep.subr.mxu0 0.0
    %51 = vmatpush1.msra.mxu0 0.0
    %52 = vmatprep.subr.mxu0 0.0
    %53 = vmatpush1.msra.mxu0 0.0
    %54 = vmatprep.subr.mxu0 0.0
    %55 = vmatpush1.msra.mxu0 0.0
    %56 = vmatprep.subr.mxu0 0.0
    %57 = vmatpush1.msra.mxu0 0.0
    %58 = vmatprep.subr.mxu0 0.0
    %59 = vmatpush1.msra.mxu0 0.0
    %60 = vmatprep.subr.mxu0 0.0
    %61 = vmatpush1.msra.mxu0 %v16
    %62 = vmatprep.subr.mxu0 0.0
    %63 = vmatpush2.msra.mxu0 0.0
    %64 = vmatprep.subr.mxu0 0.0
    %65 = vmatpush2.msra.mxu0 0.0
    %66 = vmatprep.subr.mxu0 0.0
    %67 = vmatpush2.msra.mxu0 0.0
    %68 = vmatprep.subr.mxu0 0.0
    %69 = vmatpush2.msra.mxu0 0.0
    %70 = vmatprep.subr.mxu0 0.0
    %71 = vmatpush2.msra.mxu0 0.0
    %72 = vmatprep.subr.mxu0 0.0
    %73 = vmatpush2.msra.mxu0 0.0
    %74 = vmatprep.subr.mxu0 0.0
    %75 = vmatpush2.msra.mxu0 0.0
    %76 = vmatprep.subr.mxu0 0.0
    %77 = vmatpush2.msra.mxu0 0.0
    %78 = vmatprep.subr.mxu0 0.0
    %79 = vmatpush2.msra.mxu0 0.0
    %80 = vmatprep.subr.mxu0 0.0
    %81 = vmatpush2.msra.mxu0 0.0
    %82 = vmatprep.subr.mxu0 0.0
    %83 = vmatpush2.msra.mxu0 0.0
    %84 = vmatprep.subr.mxu0 0.0
    %85 = vmatpush2.msra.mxu0 0.0
    %86 = vmatprep.subr.mxu0 0.0
    %87 = vmatpush2.msra.mxu0 0.0
    %88 = vmatprep.subr.mxu0 0.0
    %89 = vmatpush2.msra.mxu0 0.0
    %90 = vmatprep.subr.mxu0 0.0
    %91 = vmatpush2.msra.mxu0 0.0
    %92 = vmatprep.subr.mxu0 0.0
    %93 = vmatpush2.msra.mxu0 0.0
    %94 = vmatprep.mubr.f32.mxu0 0.0
    %95 = vmatmul.mubr.f32.gmra.mxu0 %v19
    %v96 = vpop.f32.mrf.mxu0
    %v97 = vadd.f32 0.0, %v96
    %v98 = vpop.f32.mrf.mxu0
    %99 = vmatprep.mubr.f32.mxu0 0.0
    %100 = vmatmul.mubr.f32.gmra.mxu0 %v22
    %v101 = vpop.f32.mrf.mxu0
    %v102 = vadd.f32 0.0, %v101
    %v103 = vpop.f32.mrf.mxu0
    %104 = vmatprep.mubr.f32.mxu0 0.0
    %105 = vmatmul.mubr.f32.gmra.mxu0 %v25
    %v106 = vpop.f32.mrf.mxu0
    %v107 = vadd.f32 0.0, %v106
    %v108 = vpop.f32.mrf.mxu0
    %109 = vmatprep.mubr.f32.mxu0 0.0
    %110 = vmatmul.mubr.f32.gmra.mxu0 %v28
    %v111 = vpop.f32.mrf.mxu0
    %v112 = vadd.f32 0.0, %v111
    %v113 = vpop.f32.mrf.mxu0
    %114 = vdwg.mxu0
    %vm115 = vcmask 261120
    %116 = vst.msk [vmem:[#allocation2] sm:$0xff] %vm115, %v97
    %117 = vst.msk [vmem:[#allocation2 + $0x8] sm:$0xff] %vm115, %v102
    %118 = vst.msk [vmem:[#allocation2 + $0x10] sm:$0xff] %vm115, %v107
    %119 = vst.msk [vmem:[#allocation2 + $0x18] sm:$0xff] %vm115, %v112
    // Predicated region
    $region10: #{tpu_custom_call.1} parent=1 // pred_check
      _
    $region11: #{tpu_custom_call.1} parent=1 // pred_check_branch
      %121 = sbr.rel (0) target = $region13
    $region12: #{tpu_custom_call.1} parent=1 // pred_region
      %s123 = ssub.s32 512, 512
      %124 = vsyncadd [#allocation3], %s123
      %s125 = sshll.u32 [#allocation2], 4
      %s126 = int_to_ptr.vmem [resolvable:$true] %s125
      %131 = dma.vmem_to_hbm [thread:$0]  %s126, 512, %s2, [#allocation3], 128, 128, 8
    $region13: #{tpu_custom_call.1} parent=1 // pred_fallthru
      _
    // Predicated region
    $region14: #{tpu_custom_call.1} parent=1 // pred_check
      _
    $region15: #{tpu_custom_call.1} parent=1 // pred_check_branch
      %133 = sbr.rel (0) target = $region17
    $region16: #{tpu_custom_call.1} parent=1 // pred_region
      %134 = dma.done [#allocation3], 512
    $region17: #{tpu_custom_call.1} parent=1 // pred_fallthru
      _
    %135 = vsyncpa [#allocation3], 1

</llo_original>
